<compile_context>
chip_gen: v7x
topology: tpu7x:2x2x1
jax: 0.10.0
libtpu: 0.0.40
codegen_flags: <defaults>
</compile_context>

<pallas_src>
import jax
import jax.numpy as jnp
from jax import lax
from jax.experimental import pallas as pl
from jax.experimental.pallas import tpu as pltpu

EPS = 1e-5  # RevIN eps


def rlinear_kernel(x_ref, w_ref, rsw_ref, b_ref, s1_ref, abinv_ref, invaw_ref,
                   o_ref):
    # x_ref    : (L, T)    time on sublanes, (batch*)series on lanes
    # w_ref    : (H+1, L)  Linear weight with an appended 1/L "mean" row
    # rsw_ref  : (H, 1)    rowsum(W), f32
    # b_ref    : (H, 1)    Linear bias, f32
    # s1_ref   : (1, T)    aw / (aw + eps^2), f32
    # abinv_ref: (1, T)    ab / (aw + eps^2), f32
    # invaw_ref: (1, T)    1  / (aw + eps^2), f32
    # o_ref    : (H, T)
    H = o_ref.shape[0]
    x = x_ref[...]                                   # native dtype (MXU operand)

    # Fused MXU pass: rows [0:H] = W @ x, row [H] = mean(x) over time.
    z = jnp.dot(w_ref[...], x, preferred_element_type=jnp.float32)  # (H+1, T)
    zraw = z[:H, :]                                  # (H, T)
    mean = z[H:H + 1, :]                             # (1, T)

    # Variance: numerically safe centered two-pass (unbiased=False).
    xc = x.astype(jnp.float32) - mean                # (L, T)
    var = jnp.mean(xc * xc, axis=0, keepdims=True)   # (1, T)
    inv_std = lax.rsqrt(var + EPS)                   # EUP slot
    stdev = (var + EPS) * inv_std                    # == sqrt(var + EPS)

    rsw = rsw_ref[...]                               # (H, 1)
    b = b_ref[...]                                   # (H, 1)
    s1 = s1_ref[...]                                 # (1, T)
    ab_inv = abinv_ref[...]                          # (1, T)
    inv_aw = invaw_ref[...]                          # (1, T)

    # TODO(synk): training-mode dropout (random mask + 1/(1-p) rescale) not
    # emitted; the RevIN-around-matmul fusion below relies on dropout=identity.
    c2 = (rsw - 1.0) * ab_inv + b * inv_aw           # (H, T)
    out = s1 * (zraw - mean * rsw) + stdev * c2 + mean
    o_ref[...] = out.astype(o_ref.dtype)


def rlinear_forward(x, W, b, affine_w, affine_b, *, lane_tile=1024):
    """x: (B, L, N) -> (B, H, N).  W: (H, L), b: (H,), affine_*: (N,)."""
    B, L, N = x.shape
    H = W.shape[0]
    dt = x.dtype
    lane_tile = max(128, (lane_tile // 128) * 128)

    # ---- parameter-only precompute (O(H + N), hoisted out of the kernel) ----
    mean_row = jnp.full((1, L), 1.0 / L, dtype=W.dtype)
    W_aug = jnp.concatenate([W, mean_row], axis=0).astype(dt)         # (H+1, L)
    rsw = jnp.sum(W.astype(jnp.float32), axis=1).reshape(H, 1)        # (H, 1)
    b_col = b.astype(jnp.float32).reshape(H, 1)                       # (H, 1)
    aw = affine_w.astype(jnp.float32)
    ab = affine_b.astype(jnp.float32)
    inv_aw = 1.0 / (aw + EPS * EPS)                                   # (N,)
    s1 = aw * inv_aw                                                  # (N,)
    ab_inv = ab * inv_aw                                              # (N,)

    if N % 128 == 0 and N >= 128:
        # ---- direct path: no layout passes, grid over (batch, N/tn) ----
        tn = min(lane_tile, N)
        if B * pl.cdiv(N, tn) < 2 and tn > 128:
            tn = max(128, ((tn // 2) // 128) * 128)   # >=2 steps for v7x 2 TCs
        grid = (B, pl.cdiv(N, tn))
        return pl.pallas_call(
            rlinear_kernel,
            out_shape=jax.ShapeDtypeStruct((B, H, N), dt),
            grid=grid,
            in_specs=[
                pl.BlockSpec((pl.Squeezed(), L, tn), lambda bb, j: (bb, 0, j)),
                pl.BlockSpec((H + 1, L), lambda bb, j: (0, 0)),
                pl.BlockSpec((H, 1), lambda bb, j: (0, 0)),
                pl.BlockSpec((H, 1), lambda bb, j: (0, 0)),
                pl.BlockSpec((1, tn), lambda bb, j: (0, j)),
                pl.BlockSpec((1, tn), lambda bb, j: (0, j)),
                pl.BlockSpec((1, tn), lambda bb, j: (0, j)),
            ],
            out_specs=pl.BlockSpec((pl.Squeezed(), H, tn),
                                   lambda bb, j: (bb, 0, j)),
            compiler_params=pltpu.CompilerParams(
                dimension_semantics=("parallel", "parallel")),
        )(x, W_aug, rsw, b_col,
          s1.reshape(1, N), ab_inv.reshape(1, N), inv_aw.reshape(1, N))

    # ---- fallback: small/odd N -> lane-dense (L, B*N) flattened layout ----
    M = B * N
    x_flat = jnp.transpose(x, (1, 0, 2)).reshape(L, M)
    s1_f = jnp.tile(s1, B).reshape(1, M)
    ab_f = jnp.tile(ab_inv, B).reshape(1, M)
    iaw_f = jnp.tile(inv_aw, B).reshape(1, M)

    if M <= lane_tile:
        if M >= 256 and M % 256 == 0:
            tm = M // 2                 # >=2 lane-parallel steps for v7x 2 TCs
        else:
            tm = M                      # full-width block (== array dim, valid)
    else:
        tm = lane_tile                  # 128-multiple; last block may be partial

    grid = (pl.cdiv(M, tm),)
    out_flat = pl.pallas_call(
        rlinear_kernel,
        out_shape=jax.ShapeDtypeStruct((H, M), dt),
        grid=grid,
        in_specs=[
            pl.BlockSpec((L, tm), lambda i: (0, i)),
            pl.BlockSpec((H + 1, L), lambda i: (0, 0)),
            pl.BlockSpec((H, 1), lambda i: (0, 0)),
            pl.BlockSpec((H, 1), lambda i: (0, 0)),
            pl.BlockSpec((1, tm), lambda i: (0, i)),
            pl.BlockSpec((1, tm), lambda i: (0, i)),
            pl.BlockSpec((1, tm), lambda i: (0, i)),
        ],
        out_specs=pl.BlockSpec((H, tm), lambda i: (0, i)),
        compiler_params=pltpu.CompilerParams(
            dimension_semantics=("parallel",)),
    )(x_flat, W_aug, rsw, b_col, s1_f, ab_f, iaw_f)
    return out_flat.reshape(H, B, N).transpose(1, 0, 2)


def rlinear_reference(x, W, b, affine_w, affine_b):
    # Pure-JAX reference (mirrors the PyTorch module, eval mode).
    mean = jnp.mean(x, axis=1, keepdims=True)
    var = jnp.mean((x - mean) ** 2, axis=1, keepdims=True)
    stdev = jnp.sqrt(var + EPS)
    xn = (x - mean) / stdev * affine_w + affine_b
    z = jnp.einsum('bln,hl->bhn', xn, W) + b[None, :, None]
    z = (z - affine_b) / (affine_w + EPS * EPS)
    return z * stdev + mean


if __name__ == "__main__":
    key = jax.random.PRNGKey(0)
    k1, k2, k3, k4, k5, k6 = jax.random.split(key, 6)

    # Config A: past_history=16, forecast_horizon=8, num_series=4, batch=2.
    # Small num_series -> lane-dense flattened fallback path.
    B, L, N, H = 2, 16, 4, 8
    x = jax.random.normal(k1, (B, L, N), dtype=jnp.float32)
    bound = 1.0 / (L ** 0.5)  # nn.Linear init range
    W = jax.random.uniform(k2, (H, L), jnp.float32, -bound, bound)
    b = jax.random.uniform(k3, (H,), jnp.float32, -bound, bound)
    affine_w = jnp.ones((N,), jnp.float32)   # RevIN default affine init
    affine_b = jnp.zeros((N,), jnp.float32)

    out = jax.block_until_ready(rlinear_forward(x, W, b, affine_w, affine_b))
    ref = rlinear_reference(x, W, b, affine_w, affine_b)
    assert out.shape == (B, H, N)
    assert jnp.allclose(out, ref, atol=1e-4, rtol=1e-4)

    # Config B: lane-sized num_series (direct (B, L, N) path, no layout passes)
    # with non-trivial (learned) RevIN affine parameters.
    B2, L2, N2, H2 = 2, 16, 128, 8
    x2 = jax.random.normal(k4, (B2, L2, N2), dtype=jnp.float32)
    W2 = jax.random.uniform(k5, (H2, L2), jnp.float32, -bound, bound)
    b2 = jax.random.uniform(k6, (H2,), jnp.float32, -bound, bound)
    affine_w2 = 1.0 + 0.1 * jax.random.normal(jax.random.PRNGKey(1), (N2,), jnp.float32)
    affine_b2 = 0.1 * jax.random.normal(jax.random.PRNGKey(2), (N2,), jnp.float32)

    out2 = jax.block_until_ready(rlinear_forward(x2, W2, b2, affine_w2, affine_b2))
    ref2 = rlinear_reference(x2, W2, b2, affine_w2, affine_b2)
    assert out2.shape == (B2, H2, N2)
    assert jnp.allclose(out2, ref2, atol=1e-4, rtol=1e-4)

    print("KERNEL_OK")
</pallas_src>

<mosaic_0001>
module attributes {stable_mosaic.version = 11 : i64} {
  func.func @rlinear_kernel(%arg0: i32, %arg1: memref<16x8xf32, #tpu.memory_space<vmem>>, %arg2: memref<9x16xf32, #tpu.memory_space<vmem>>, %arg3: memref<8x1xf32, #tpu.memory_space<vmem>>, %arg4: memref<8x1xf32, #tpu.memory_space<vmem>>, %arg5: memref<1x8xf32, #tpu.memory_space<vmem>>, %arg6: memref<1x8xf32, #tpu.memory_space<vmem>>, %arg7: memref<1x8xf32, #tpu.memory_space<vmem>>, %arg8: memref<8x8xf32, #tpu.memory_space<vmem>>) attributes {dimension_semantics = [#tpu.dimension_semantics<parallel>], iteration_bounds = array<i64: 1>, scalar_prefetch = 0 : i64, scratch_operands = 0 : i64, tpu.core_type = #tpu.core_type<tc>, window_params = [{transform_indices = @transform_0, window_bounds = array<i64: 16, 8>}, {pipeline_mode = #tpu.pipeline_mode<synchronous>, transform_indices = @transform_1, window_bounds = array<i64: 9, 16>}, {pipeline_mode = #tpu.pipeline_mode<synchronous>, transform_indices = @transform_2, window_bounds = array<i64: 8, 1>}, {pipeline_mode = #tpu.pipeline_mode<synchronous>, transform_indices = @transform_3, window_bounds = array<i64: 8, 1>}, {transform_indices = @transform_4, window_bounds = array<i64: 1, 8>}, {transform_indices = @transform_5, window_bounds = array<i64: 1, 8>}, {transform_indices = @transform_6, window_bounds = array<i64: 1, 8>}, {transform_indices = @transform_7, window_bounds = array<i64: 8, 8>}]} {
    %c0 = arith.constant 0 : index
    %c0_0 = arith.constant 0 : index
    %0 = vector.load %arg1[%c0, %c0_0] : memref<16x8xf32, #tpu.memory_space<vmem>>, vector<16x8xf32>
    %c0_1 = arith.constant 0 : index
    %c0_2 = arith.constant 0 : index
    %1 = vector.load %arg2[%c0_1, %c0_2] : memref<9x16xf32, #tpu.memory_space<vmem>>, vector<9x16xf32>
    %cst = arith.constant dense<0.000000e+00> : vector<9x8xf32>
    %2 = tpu.matmul %1, %0, %cst {dimension_numbers = #tpu.dot_dimension_numbers<[1], [0], [0], [1], [0, 0, 1, 1], [], []>} : vector<9x16xf32>, vector<16x8xf32>, vector<9x8xf32> -> vector<9x8xf32>
    %3 = vector.extract_strided_slice %2 {offsets = [0, 0], sizes = [8, 8], strides = [1, 1]} : vector<9x8xf32> to vector<8x8xf32>
    %4 = vector.extract_strided_slice %2 {offsets = [8, 0], sizes = [1, 8], strides = [1, 1]} : vector<9x8xf32> to vector<1x8xf32>
    %5 = vector.broadcast %4 : vector<1x8xf32> to vector<16x8xf32>
    %6 = arith.subf %0, %5 : vector<16x8xf32>
    %7 = arith.mulf %6, %6 : vector<16x8xf32>
    %cst_3 = arith.constant dense<0.000000e+00> : vector<8xf32>
    %8 = vector.multi_reduction <add>, %7, %cst_3 [0] : vector<16x8xf32> to vector<8xf32>
    %9 = vector.shape_cast %8 : vector<8xf32> to vector<1x8xf32>
    %cst_4 = arith.constant 1.600000e+01 : f32
    %10 = vector.broadcast %cst_4 : f32 to vector<1x8xf32>
    %11 = arith.divf %9, %10 : vector<1x8xf32>
    %cst_5 = arith.constant 9.99999974E-6 : f32
    %12 = vector.broadcast %cst_5 : f32 to vector<1x8xf32>
    %13 = arith.addf %11, %12 : vector<1x8xf32>
    %14 = math.rsqrt %13 : vector<1x8xf32>
    %cst_6 = arith.constant 9.99999974E-6 : f32
    %15 = vector.broadcast %cst_6 : f32 to vector<1x8xf32>
    %16 = arith.addf %11, %15 : vector<1x8xf32>
    %17 = arith.mulf %16, %14 : vector<1x8xf32>
    %c0_7 = arith.constant 0 : index
    %c0_8 = arith.constant 0 : index
    %18 = vector.load %arg3[%c0_7, %c0_8] : memref<8x1xf32, #tpu.memory_space<vmem>>, vector<8x1xf32>
    %c0_9 = arith.constant 0 : index
    %c0_10 = arith.constant 0 : index
    %19 = vector.load %arg4[%c0_9, %c0_10] : memref<8x1xf32, #tpu.memory_space<vmem>>, vector<8x1xf32>
    %c0_11 = arith.constant 0 : index
    %c0_12 = arith.constant 0 : index
    %20 = vector.load %arg5[%c0_11, %c0_12] : memref<1x8xf32, #tpu.memory_space<vmem>>, vector<1x8xf32>
    %c0_13 = arith.constant 0 : index
    %c0_14 = arith.constant 0 : index
    %21 = vector.load %arg6[%c0_13, %c0_14] : memref<1x8xf32, #tpu.memory_space<vmem>>, vector<1x8xf32>
    %c0_15 = arith.constant 0 : index
    %c0_16 = arith.constant 0 : index
    %22 = vector.load %arg7[%c0_15, %c0_16] : memref<1x8xf32, #tpu.memory_space<vmem>>, vector<1x8xf32>
    %cst_17 = arith.constant 1.000000e+00 : f32
    %23 = vector.broadcast %cst_17 : f32 to vector<8x1xf32>
    %24 = arith.subf %18, %23 : vector<8x1xf32>
    %25 = vector.broadcast %24 : vector<8x1xf32> to vector<8x8xf32>
    %26 = vector.broadcast %21 : vector<1x8xf32> to vector<8x8xf32>
    %27 = arith.mulf %25, %26 : vector<8x8xf32>
    %28 = vector.broadcast %19 : vector<8x1xf32> to vector<8x8xf32>
    %29 = vector.broadcast %22 : vector<1x8xf32> to vector<8x8xf32>
    %30 = arith.mulf %28, %29 : vector<8x8xf32>
    %31 = arith.addf %27, %30 : vector<8x8xf32>
    %32 = vector.broadcast %4 : vector<1x8xf32> to vector<8x8xf32>
    %33 = vector.broadcast %18 : vector<8x1xf32> to vector<8x8xf32>
    %34 = arith.mulf %32, %33 : vector<8x8xf32>
    %35 = arith.subf %3, %34 : vector<8x8xf32>
    %36 = vector.broadcast %20 : vector<1x8xf32> to vector<8x8xf32>
    %37 = arith.mulf %36, %35 : vector<8x8xf32>
    %38 = vector.broadcast %17 : vector<1x8xf32> to vector<8x8xf32>
    %39 = arith.mulf %38, %31 : vector<8x8xf32>
    %40 = arith.addf %37, %39 : vector<8x8xf32>
    %41 = vector.broadcast %4 : vector<1x8xf32> to vector<8x8xf32>
    %42 = arith.addf %40, %41 : vector<8x8xf32>
    %c0_18 = arith.constant 0 : index
    %c0_19 = arith.constant 0 : index
    %43 = vector.load %arg8[%c0_18, %c0_19] : memref<8x8xf32, #tpu.memory_space<vmem>>, vector<8x8xf32>
    tpu.vector_store %arg8[%c0_18, %c0_19], %42 {strides = array<i32>} : memref<8x8xf32, #tpu.memory_space<vmem>>, vector<8x8xf32>,
    return
  }
  func.func @transform_0(%arg0: i32) -> (i32, i32) {
    %c0_i32 = arith.constant 0 : i32
    %c0_i32_0 = arith.constant 0 : i32
    return %c0_i32, %arg0 : i32, i32
  }
  func.func @transform_1(%arg0: i32) -> (i32, i32) {
    %c0_i32 = arith.constant 0 : i32
    %c0_i32_0 = arith.constant 0 : i32
    %c0_i32_1 = arith.constant 0 : i32
    return %c0_i32, %c0_i32_0 : i32, i32
  }
  func.func @transform_2(%arg0: i32) -> (i32, i32) {
    %c0_i32 = arith.constant 0 : i32
    %c0_i32_0 = arith.constant 0 : i32
    %c0_i32_1 = arith.constant 0 : i32
    return %c0_i32, %c0_i32_0 : i32, i32
  }
  func.func @transform_3(%arg0: i32) -> (i32, i32) {
    %c0_i32 = arith.constant 0 : i32
    %c0_i32_0 = arith.constant 0 : i32
    %c0_i32_1 = arith.constant 0 : i32
    return %c0_i32, %c0_i32_0 : i32, i32
  }
  func.func @transform_4(%arg0: i32) -> (i32, i32) {
    %c0_i32 = arith.constant 0 : i32
    %c0_i32_0 = arith.constant 0 : i32
    return %c0_i32, %arg0 : i32, i32
  }
  func.func @transform_5(%arg0: i32) -> (i32, i32) {
    %c0_i32 = arith.constant 0 : i32
    %c0_i32_0 = arith.constant 0 : i32
    return %c0_i32, %arg0 : i32, i32
  }
  func.func @transform_6(%arg0: i32) -> (i32, i32) {
    %c0_i32 = arith.constant 0 : i32
    %c0_i32_0 = arith.constant 0 : i32
    return %c0_i32, %arg0 : i32, i32
  }
  func.func @transform_7(%arg0: i32) -> (i32, i32) {
    %c0_i32 = arith.constant 0 : i32
    %c0_i32_0 = arith.constant 0 : i32
    return %c0_i32, %arg0 : i32, i32
  }
}

</mosaic_0001>

<llo_original>
// kernel: tpu_custom_call.1
$region0: #{tpu_custom_call.1}
  #allocation0 [shape = 'u32[]', space=smem, size = 0x4, offset = 0x4, fixed_abs, tag = 'smem constant byte address 0x4 - core index']
  #allocation1 [shape = 'u32[144,128]{1,0:T(1,128)}', space=vmem, size = 0x12000, scoped, tag = 'internal scratch']
  %s0 = inlined_call_operand.vmem [shape: f32[16,8], index: 0, kind: input, shape index: {}]
  %s1 = inlined_call_operand.vmem [shape: f32[9,16], index: 1, kind: input, shape index: {}]
  %s2 = inlined_call_operand.vmem [shape: f32[8,1], index: 2, kind: input, shape index: {}]
  %s3 = inlined_call_operand.vmem [shape: f32[8,1], index: 3, kind: input, shape index: {}]
  %s4 = inlined_call_operand.vmem [shape: f32[1,8], index: 4, kind: input, shape index: {}]
  %s5 = inlined_call_operand.vmem [shape: f32[1,8], index: 5, kind: input, shape index: {}]
  %s6 = inlined_call_operand.vmem [shape: f32[1,8], index: 6, kind: input, shape index: {}]
  %s7 = inlined_call_operand.hbm [shape: f32[8,8], index: 7, kind: output, shape index: {}]
  %s8 = sld [smem:[#allocation0]]
  $region38: #{tpu_custom_call.1} parent=0
    _
  %s10 = ssub.s32 1, %s8
  %s11 = scalar_select 0, %s10, %s8
  $region1: #{tpu_custom_call.1} parent=0
    #allocation2 [shape = 'u8[4096]{0}', space=vmem, size = 0x1000, scoped, tag = 'output window, operand 0, single buffered']
    #allocation3 [shape = 's32[1]{0}', space=sflag, size = 0x4, scoped, tag = 'scoped memory for tpu_custom_call.1']
    %12 = vsyncpa [#allocation3], 0
    // Predicated region
    $region2: #{tpu_custom_call.1} parent=1 // pred_check
      _
    $region3: #{tpu_custom_call.1} parent=1 // pred_check_branch
      %14 = sbr.rel (0) target = $region5
    $region4: #{tpu_custom_call.1} parent=1 // pred_region
      _
    $region5: #{tpu_custom_call.1} parent=1 // pred_fallthru
      _
    // Predicated region
    $region6: #{tpu_custom_call.1} parent=1 // pred_check
      _
    $region7: #{tpu_custom_call.1} parent=1 // pred_check_branch
      %16 = sbr.rel (0) target = $region9
    $region8: #{tpu_custom_call.1} parent=1 // pred_region
      _
    $region9: #{tpu_custom_call.1} parent=1 // pred_fallthru
      _
    // Predicated region
    $region10: #{tpu_custom_call.1} parent=1 // pred_check
      _
    $region11: #{tpu_custom_call.1} parent=1 // pred_check_branch
      %18 = sbr.rel (0) target = $region13
    $region12: #{tpu_custom_call.1} parent=1 // pred_region
      _
    $region13: #{tpu_custom_call.1} parent=1 // pred_fallthru
      _
    // Predicated region
    $region14: #{tpu_custom_call.1} parent=1 // pred_check
      _
    $region15: #{tpu_custom_call.1} parent=1 // pred_check_branch
      %20 = sbr.rel (0) target = $region17
    $region16: #{tpu_custom_call.1} parent=1 // pred_region
      _
    $region17: #{tpu_custom_call.1} parent=1 // pred_fallthru
      _
    // Predicated region
    $region18: #{tpu_custom_call.1} parent=1 // pred_check
      _
    $region19: #{tpu_custom_call.1} parent=1 // pred_check_branch
      %22 = sbr.rel (0) target = $region21
    $region20: #{tpu_custom_call.1} parent=1 // pred_region
      _
    $region21: #{tpu_custom_call.1} parent=1 // pred_fallthru
      _
    // Predicated region
    $region22: #{tpu_custom_call.1} parent=1 // pred_check
      _
    $region23: #{tpu_custom_call.1} parent=1 // pred_check_branch
      %24 = sbr.rel (0) target = $region25
    $region24: #{tpu_custom_call.1} parent=1 // pred_region
      _
    $region25: #{tpu_custom_call.1} parent=1 // pred_fallthru
      _
    // Predicated region
    $region26: #{tpu_custom_call.1} parent=1 // pred_check
      _
    $region27: #{tpu_custom_call.1} parent=1 // pred_check_branch
      %26 = sbr.rel (0) target = $region29
    $region28: #{tpu_custom_call.1} parent=1 // pred_region
      _
    $region29: #{tpu_custom_call.1} parent=1 // pred_fallthru
      _
    %v27 = vld [vmem:[%s0] sm:$0xff]
    %v28 = vld [vmem:[%s0 + $0x8] sm:$0xff]
    %v29 = vld [vmem:[%s1] sm:$0xff]
    %v30 = vld [vmem:[%s1 + $0x8] sm:$0x1]
    %vm31 = vcmask 130048
    %v33 = vsel %vm31, %v29, 0
    %v36 = vsel %vm31, %v30, 0
    %38 = vmatprep.subr.mxu0 0.0
    %39 = vmatpush1.msra.mxu0 %v27
    %40 = vmatprep.subr.mxu0 0.0
    %41 = vmatpush1.msra.mxu0 %v28
    %42 = vmatprep.subr.mxu0 0.0
    %43 = vmatpush1.msra.mxu0 0.0
    %44 = vmatprep.subr.mxu0 0.0
    %45 = vmatpush1.msra.mxu0 0.0
    %46 = vmatprep.subr.mxu0 0.0
    %47 = vmatpush1.msra.mxu0 0.0
    %48 = vmatprep.subr.mxu0 0.0
    %49 = vmatpush1.msra.mxu0 0.0
    %50 = vmatprep.subr.mxu0 0.0
    %51 = vmatpush1.msra.mxu0 0.0
    %52 = vmatprep.subr.mxu0 0.0
    %53 = vmatpush1.msra.mxu0 0.0
    %54 = vmatprep.subr.mxu0 0.0
    %55 = vmatpush1.msra.mxu0 0.0
    %56 = vmatprep.subr.mxu0 0.0
    %57 = vmatpush1.msra.mxu0 0.0
    %58 = vmatprep.subr.mxu0 0.0
    %59 = vmatpush1.msra.mxu0 0.0
    %60 = vmatprep.subr.mxu0 0.0
    %61 = vmatpush1.msra.mxu0 0.0
    %62 = vmatprep.subr.mxu0 0.0
    %63 = vmatpush1.msra.mxu0 0.0
    %64 = vmatprep.subr.mxu0 0.0
    %65 = vmatpush1.msra.mxu0 0.0
    %66 = vmatprep.subr.mxu0 0.0
    %67 = vmatpush1.msra.mxu0 0.0
    %68 = vmatprep.subr.mxu0 0.0
    %69 = vmatpush1.msra.mxu0 0.0
    %70 = vmatprep.subr.mxu0 0.0
    %71 = vmatpush1.msra.mxu0 0.0
    %72 = vmatprep.subr.mxu0 0.0
    %73 = vmatpush1.msra.mxu0 0.0
    %74 = vmatprep.subr.mxu0 0.0
    %75 = vmatpush1.msra.mxu0 0.0
    %76 = vmatprep.subr.mxu0 0.0
    %77 = vmatpush1.msra.mxu0 0.0
    %78 = vmatprep.subr.mxu0 0.0
    %79 = vmatpush1.msra.mxu0 0.0
    %80 = vmatprep.subr.mxu0 0.0
    %81 = vmatpush1.msra.mxu0 0.0
    %82 = vmatprep.subr.mxu0 0.0
    %83 = vmatpush1.msra.mxu0 0.0
    %84 = vmatprep.subr.mxu0 0.0
    %85 = vmatpush1.msra.mxu0 0.0
    %86 = vmatprep.subr.mxu0 0.0
    %87 = vmatpush1.msra.mxu0 0.0
    %88 = vmatprep.subr.mxu0 0.0
    %89 = vmatpush1.msra.mxu0 0.0
    %90 = vmatprep.subr.mxu0 0.0
    %91 = vmatpush1.msra.mxu0 0.0
    %92 = vmatprep.subr.mxu0 0.0
    %93 = vmatpush1.msra.mxu0 0.0
    %94 = vmatprep.subr.mxu0 0.0
    %95 = vmatpush1.msra.mxu0 0.0
    %96 = vmatprep.subr.mxu0 0.0
    %97 = vmatpush1.msra.mxu0 0.0
    %98 = vmatprep.subr.mxu0 0.0
    %99 = vmatpush1.msra.mxu0 0.0
    %100 = vmatprep.subr.mxu0 0.0
    %101 = vmatpush1.msra.mxu0 0.0
    %102 = vmatprep.mubr.f32.mxu0 0.0
    %103 = vmatmul.mubr.f32.gmra.mrb[0].mxu0 %v33
    %v104 = vpop.f32.mrb[0].mxu0
    %v105 = vadd.f32 0.0, %v104
    %v106 = vpop.f32.mrb[0].mxu0
    %107 = vmatprep.mubr.f32.mxu0 0.0
    %108 = vmatmul.mubr.f32.gmra.mrb[0].mxu0 %v36
    %v109 = vpop.f32.mrb[0].mxu0
    %v110 = vadd.f32 0.0, %v109
    %v111 = vpop.f32.mrb[0].mxu0
    %112 = vdwg.mxu0
    %v113 = vlaneseq
    %v114 = vshrl.u32 %v113, 7
    %v115 = vsub.s32 0, %v114
    %v116 = vrot.slane %v110, %v115
    %v117 = vsub.f32 %v27, %v116
    %v118 = vsub.f32 %v28, %v116
    %v119 = vmul.f32 %v117, %v117
    %v120 = vmul.f32 %v118, %v118
    %vm121 = vcmask 64512
    %v122 = vsel %vm121, %v119, 0.0
    %v123 = vsel %vm121, %v120, 0.0
    %v124 = vadd.f32 %v122, %v123
    %v125 = vrot.slane %v124, 4
    %v126 = vadd.f32 %v124, %v125
    %v127 = vrot.slane %v126, 2
    %v128 = vadd.f32 %v126, %v127
    %v129 = vrot.slane %v128, 1
    %v130 = vadd.f32 %v128, %v129
    %v131 = vrcp.pop 16.0
    %v132 = vmul.f32 %v130, %v131
    %v133 = vadd.f32 %v132, 1e-05
    %v134 = vrsqrt.pop %v133
    %v135 = vmul.f32 %v133, %v134
    %v136 = vld [vmem:[%s2] sm:$0xff]
    %v137 = vld [vmem:[%s3] sm:$0xff]
    %v138 = vld [vmem:[%s4] sm:$0x1]
    %v139 = vld [vmem:[%s5] sm:$0x1]
    %v140 = vld [vmem:[%s6] sm:$0x1]
    %v141 = vsub.f32 %v136, 1.0
    %143 = vset.pattern.permute.xlu0 0
    %144 = vperm.xlu0 %143, %v141
    %v145 = vpop.permute.xlu0 %144
    %v148 = vlaneseq
    %v149 = vshrl.u32 %v148, 7
    %v150 = vsub.s32 0, %v149
    %v151 = vrot.slane %v139, %v150
    %v153 = vmul.f32 %v145, %v151
    %155 = vset.pattern.permute.xlu0 0
    %156 = vperm.xlu0 %155, %v137
    %v157 = vpop.permute.xlu0 %156
    %v160 = vlaneseq
    %v161 = vshrl.u32 %v160, 7
    %v162 = vsub.s32 0, %v161
    %v163 = vrot.slane %v140, %v162
    %v165 = vmul.f32 %v157, %v163
    %v166 = vadd.f32 %v153, %v165
    %168 = vset.pattern.permute.xlu0 0
    %169 = vperm.xlu0 %168, %v136
    %v170 = vpop.permute.xlu0 %169
    %v172 = vmul.f32 %v116, %v170
    %v173 = vsub.f32 %v105, %v172
    %v175 = vlaneseq
    %v176 = vshrl.u32 %v175, 7
    %v177 = vsub.s32 0, %v176
    %v178 = vrot.slane %v138, %v177
    %v180 = vmul.f32 %v178, %v173
    %v181 = vmul.f32 %v135, %v166
    %v182 = vadd.f32 %v180, %v181
    %v183 = vadd.f32 %v182, %v116
    %184 = vst.msk [vmem:[#allocation2] sm:$0xff] %vm121, %v183
    // Predicated region
    $region30: #{tpu_custom_call.1} parent=1 // pred_check
      _
    $region31: #{tpu_custom_call.1} parent=1 // pred_check_branch
      %186 = sbr.rel (0) target = $region33
    $region32: #{tpu_custom_call.1} parent=1 // pred_region
      %s188 = ssub.s32 128, 128
      %189 = vsyncadd [#allocation3], %s188
      %s191 = sshll.u32 [#allocation2], 4
      %s192 = int_to_ptr.vmem [resolvable:$true] %s191
      %194 = dma.vmem_to_hbm [thread:$0]  %s192, 128, %s7, [#allocation3]
    $region33: #{tpu_custom_call.1} parent=1 // pred_fallthru
      _
    // Predicated region
    $region34: #{tpu_custom_call.1} parent=1 // pred_check
      _
    $region35: #{tpu_custom_call.1} parent=1 // pred_check_branch
      %196 = sbr.rel (0) target = $region37
    $region36: #{tpu_custom_call.1} parent=1 // pred_region
      %197 = dma.done [#allocation3], 128
    $region37: #{tpu_custom_call.1} parent=1 // pred_fallthru
      _
    %198 = vsyncpa [#allocation3], 1

</llo_original>
